<compile_context>
chip_gen: v7x
topology: tpu7x:2x2x1
jax: 0.10.0
libtpu: 0.0.40
codegen_flags: <defaults>
</compile_context>

<pallas_src>
import functools

import jax
import jax.numpy as jnp
from jax.experimental import pallas as pl
from jax.experimental.pallas import tpu as pltpu

_LANE = 128
# Below this batch size a single whole-batch invocation beats a batch grid
# (everything is trivially VMEM-resident; grid steps only add ~0.35 us each).
_GRID_BATCH_THRESHOLD = 16384


def _qnet_kernel(x_ref, w1_ref, b1_ref, w2_ref, b2_ref, o_ref):
    """Whole-model forward for one row-tile.

    x_ref : (B, I)      float32
    w1_ref: (I, H)      float32
    b1_ref: (1, H)      float32
    w2_ref: (H, O_pad)  float32  (zero-padded to a lane-dense 128 multiple)
    b2_ref: (1, O_pad)  float32
    o_ref : (B, O_pad)  float32
    """
    x = x_ref[...]
    # linear1 + ReLU  (MXU matmul, f32 accumulate; ReLU on VPU)
    h = jnp.maximum(
        jnp.dot(x, w1_ref[...], preferred_element_type=jnp.float32) + b1_ref[...],
        0.0,
    )
    # linear2 -- full lane-dense (B, O_pad) store, no masked partial stores.
    o_ref[...] = (
        jnp.dot(h, w2_ref[...], preferred_element_type=jnp.float32) + b2_ref[...]
    )


def prepare_params(w1, b1, w2, b2):
    """One-time transform (call at init / after each optimizer step).

    Pads w2/b2 up to a lane-dense 128-column slab so the jitted forward pass
    contains no jnp.pad ops and the kernel's output store is unmasked.
    """
    out_features = w2.shape[1]
    o_pad = ((out_features + _LANE - 1) // _LANE) * _LANE
    w2p = jnp.pad(w2, ((0, 0), (0, o_pad - out_features)))
    b2p = jnp.pad(b2, ((0, 0), (0, o_pad - out_features)))
    return w1, b1, w2p, b2p


@functools.partial(jax.jit, static_argnames=("use_grid",))
def linear_qnet_forward_padded(x, w1, b1, w2p, b2p, use_grid=None):
    """Hot-path forward: relu(x @ w1 + b1) @ w2p + b2p.

    Returns the lane-padded (B, O_pad) output; columns >= true output_size are
    exactly the (broadcast) padded bias and can be ignored.  Slice / argmax
    lazily at the point of use instead of paying an extra HBM round trip here.
    """
    B, I = x.shape
    H = w1.shape[1]
    O_pad = w2p.shape[1]

    if use_grid is None:
        use_grid = (B >= _GRID_BATCH_THRESHOLD) and ((B // 2) % 8 == 0) and (B % 2 == 0)

    if use_grid:
        # Exactly 2 grid steps: one per TensorCore on v7x megacore; minimal
        # pipeline step overhead everywhere else.
        batch_tile = B // 2
        assert batch_tile % 8 == 0, "batch tile must be a multiple of 8 sublanes"
        assert B % batch_tile == 0
        return pl.pallas_call(
            _qnet_kernel,
            out_shape=jax.ShapeDtypeStruct((B, O_pad), jnp.float32),
            grid=(B // batch_tile,),
            in_specs=[
                pl.BlockSpec((batch_tile, I), lambda i: (i, 0)),
                pl.BlockSpec((I, H), lambda i: (0, 0)),
                pl.BlockSpec((1, H), lambda i: (0, 0)),
                pl.BlockSpec((H, O_pad), lambda i: (0, 0)),
                pl.BlockSpec((1, O_pad), lambda i: (0, 0)),
            ],
            out_specs=pl.BlockSpec((batch_tile, O_pad), lambda i: (i, 0)),
            compiler_params=pltpu.CompilerParams(
                dimension_semantics=("parallel",)
            ),
        )(x, w1, b1, w2p, b2p)

    # Single-invocation whole-batch path: no grid, no pipeline setup.
    # Everything lives whole in VMEM for the one kernel invocation.
    # Explicit VMEM limit so large whole-batch calls also clear v5e's 16 MiB
    # scoped default; capped at 64 MiB (v7x physical VMEM).
    est_bytes = 4 * (B * I + B * O_pad + w1.size + b1.size + w2p.size + b2p.size)
    vmem_limit = int(min(max(2 * est_bytes, 32 << 20), 64 << 20))
    vmem = pltpu.MemorySpace.VMEM
    return pl.pallas_call(
        _qnet_kernel,
        out_shape=jax.ShapeDtypeStruct((B, O_pad), jnp.float32),
        in_specs=[pl.BlockSpec(memory_space=vmem)] * 5,
        out_specs=pl.BlockSpec(memory_space=vmem),
        compiler_params=pltpu.CompilerParams(vmem_limit_bytes=vmem_limit),
    )(x, w1, b1, w2p, b2p)


def linear_qnet_forward(x, w1, b1, w2p, b2p, output_size, use_grid=None):
    """API-compatible wrapper returning the true (B, output_size) result.

    For hot loops (per-step inference / training minibatches) call
    `linear_qnet_forward_padded` directly and consume the padded slab.
    """
    out_p = linear_qnet_forward_padded(x, w1, b1, w2p, b2p, use_grid=use_grid)
    return out_p[:, :output_size]


def init_params(key, input_size, hidden_size, output_size):
    """Deterministic init matching nn.Linear's U(-1/sqrt(fan_in), 1/sqrt(fan_in))."""
    k1, k2, k3, k4 = jax.random.split(key, 4)
    bound1 = 1.0 / jnp.sqrt(input_size)
    bound2 = 1.0 / jnp.sqrt(hidden_size)
    w1 = jax.random.uniform(k1, (input_size, hidden_size), jnp.float32, -bound1, bound1)
    b1 = jax.random.uniform(k2, (1, hidden_size), jnp.float32, -bound1, bound1)
    w2 = jax.random.uniform(k3, (hidden_size, output_size), jnp.float32, -bound2, bound2)
    b2 = jax.random.uniform(k4, (1, output_size), jnp.float32, -bound2, bound2)
    return w1, b1, w2, b2


# TODO(synk): Linear_QNet.save() (torch.save checkpointing) is host I/O, not a
# kernel op -- intentionally not implemented here.


if __name__ == "__main__":
    # Snake-game DQN shapes: state vector = 11, hidden = 32, actions = 3.
    batch, input_size, hidden_size, output_size = 8, 11, 32, 3

    key = jax.random.PRNGKey(0)
    kx, kp, kxb = jax.random.split(key, 3)
    x = jax.random.normal(kx, (batch, input_size), jnp.float32)
    w1, b1, w2, b2 = init_params(kp, input_size, hidden_size, output_size)

    # One-time param preparation (outside the hot path): pad w2/b2 lane-dense.
    pw1, pb1, pw2, pb2 = prepare_params(w1, b1, w2, b2)

    # 1) Small-batch (no-grid) path -- per-environment-step inference.
    out_p = jax.block_until_ready(linear_qnet_forward_padded(x, pw1, pb1, pw2, pb2))
    ref = jnp.maximum(x @ w1 + b1, 0.0) @ w2 + b2
    assert out_p.shape == (batch, _LANE)
    assert jnp.allclose(out_p[:, :output_size], ref, atol=1e-5, rtol=1e-5)

    # 2) Replay-buffer minibatch (B=1024): still the single-invocation path --
    #    the whole problem is ~1 MiB of VMEM, so no batch grid is used.
    big_batch = 1024
    xb = jax.random.normal(kxb, (big_batch, input_size), jnp.float32)
    outb = jax.block_until_ready(
        linear_qnet_forward(xb, pw1, pb1, pw2, pb2, output_size)
    )
    refb = jnp.maximum(xb @ w1 + b1, 0.0) @ w2 + b2
    assert outb.shape == (big_batch, output_size)
    assert jnp.allclose(outb, refb, atol=1e-5, rtol=1e-5)

    # 3) Force the 2-step "parallel" grid path (v7x megacore sharding) to make
    #    sure it also compiles and matches.
    outg = jax.block_until_ready(
        linear_qnet_forward(xb, pw1, pb1, pw2, pb2, output_size, use_grid=True)
    )
    assert jnp.allclose(outg, refb, atol=1e-5, rtol=1e-5)

    print("KERNEL_OK")
</pallas_src>

<mosaic_0001>
module attributes {stable_mosaic.version = 11 : i64} {
  func.func @_qnet_kernel(%arg0: memref<8x11xf32, #tpu.memory_space<vmem>>, %arg1: memref<11x32xf32, #tpu.memory_space<vmem>>, %arg2: memref<1x32xf32, #tpu.memory_space<vmem>>, %arg3: memref<32x128xf32, #tpu.memory_space<vmem>>, %arg4: memref<1x128xf32, #tpu.memory_space<vmem>>, %arg5: memref<8x128xf32, #tpu.memory_space<vmem>>) attributes {dimension_semantics = [], scalar_prefetch = 0 : i64, scratch_operands = 0 : i64, tpu.core_type = #tpu.core_type<tc>} {
    %c0 = arith.constant 0 : index
    %c0_0 = arith.constant 0 : index
    %0 = vector.load %arg0[%c0, %c0_0] : memref<8x11xf32, #tpu.memory_space<vmem>>, vector<8x11xf32>
    %c0_1 = arith.constant 0 : index
    %c0_2 = arith.constant 0 : index
    %1 = vector.load %arg1[%c0_1, %c0_2] : memref<11x32xf32, #tpu.memory_space<vmem>>, vector<11x32xf32>
    %cst = arith.constant dense<0.000000e+00> : vector<8x32xf32>
    %2 = tpu.matmul %0, %1, %cst {dimension_numbers = #tpu.dot_dimension_numbers<[1], [0], [0], [1], [0, 0, 1, 1], [], []>} : vector<8x11xf32>, vector<11x32xf32>, vector<8x32xf32> -> vector<8x32xf32>
    %c0_3 = arith.constant 0 : index
    %c0_4 = arith.constant 0 : index
    %3 = vector.load %arg2[%c0_3, %c0_4] : memref<1x32xf32, #tpu.memory_space<vmem>>, vector<1x32xf32>
    %4 = vector.broadcast %3 : vector<1x32xf32> to vector<8x32xf32>
    %5 = arith.addf %2, %4 : vector<8x32xf32>
    %cst_5 = arith.constant 0.000000e+00 : f32
    %6 = vector.broadcast %cst_5 : f32 to vector<8x32xf32>
    %7 = arith.maximumf %5, %6 : vector<8x32xf32>
    %c0_6 = arith.constant 0 : index
    %c0_7 = arith.constant 0 : index
    %8 = vector.load %arg3[%c0_6, %c0_7] : memref<32x128xf32, #tpu.memory_space<vmem>>, vector<32x128xf32>
    %cst_8 = arith.constant dense<0.000000e+00> : vector<8x128xf32>
    %9 = tpu.matmul %7, %8, %cst_8 {dimension_numbers = #tpu.dot_dimension_numbers<[1], [0], [0], [1], [0, 0, 1, 1], [], []>} : vector<8x32xf32>, vector<32x128xf32>, vector<8x128xf32> -> vector<8x128xf32>
    %c0_9 = arith.constant 0 : index
    %c0_10 = arith.constant 0 : index
    %10 = vector.load %arg4[%c0_9, %c0_10] : memref<1x128xf32, #tpu.memory_space<vmem>>, vector<1x128xf32>
    %11 = vector.broadcast %10 : vector<1x128xf32> to vector<8x128xf32>
    %12 = arith.addf %9, %11 : vector<8x128xf32>
    %c0_11 = arith.constant 0 : index
    %c0_12 = arith.constant 0 : index
    %13 = vector.load %arg5[%c0_11, %c0_12] : memref<8x128xf32, #tpu.memory_space<vmem>>, vector<8x128xf32>
    tpu.vector_store %arg5[%c0_11, %c0_12], %12 {strides = array<i32>} : memref<8x128xf32, #tpu.memory_space<vmem>>, vector<8x128xf32>,
    return
  }
}

</mosaic_0001>

<llo_original>
// kernel: linear_qnet_forward_padded.1
$region0: #{linear_qnet_forward_padded.1}
  #allocation0 [shape = 'u32[]', space=smem, size = 0x4, offset = 0x4, fixed_abs, tag = 'smem constant byte address 0x4 - core index']
  #allocation1 [shape = 'u32[144,128]{1,0:T(1,128)}', space=vmem, size = 0x12000, scoped, tag = 'internal scratch']
  %s0 = inlined_call_operand.hbm [shape: f32[8,11], index: 0, kind: input, shape index: {}]
  %s1 = inlined_call_operand.hbm [shape: f32[11,32], index: 1, kind: input, shape index: {}]
  %s2 = inlined_call_operand.vmem [shape: f32[1,32], index: 2, kind: input, shape index: {}]
  %s3 = inlined_call_operand.hbm [shape: f32[32,128], index: 3, kind: input, shape index: {}]
  %s4 = inlined_call_operand.vmem [shape: f32[1,128], index: 4, kind: input, shape index: {}]
  %s5 = inlined_call_operand.hbm [shape: f32[8,128], index: 5, kind: output, shape index: {}]
  %s6 = sld [smem:[#allocation0]]
  $region42: #{linear_qnet_forward_padded.1} parent=0
    _
  %s8 = ssub.s32 1, %s6
  %s9 = scalar_select 0, %s8, %s6
  $region1: #{linear_qnet_forward_padded.1} parent=0
    #allocation2 [shape = 'u8[4096]{0}', space=vmem, size = 0x1000, scoped, tag = 'input window, operand 0, single buffered']
    #allocation3 [shape = 's32[1]{0}', space=sflag, size = 0x4, scoped, tag = 'scoped memory for linear_qnet_forward_padded.1']
    #allocation4 [shape = 's32[1]{0}', space=sflag, size = 0x4, scoped, tag = 'scoped memory for linear_qnet_forward_padded.1']
    #allocation5 [shape = 'u8[8192]{0}', space=vmem, size = 0x2000, scoped, tag = 'input window, operand 1, single buffered']
    #allocation6 [shape = 's32[1]{0}', space=sflag, size = 0x4, scoped, tag = 'scoped memory for linear_qnet_forward_padded.1']
    #allocation7 [shape = 'u8[16384]{0}', space=vmem, size = 0x4000, scoped, tag = 'input window, operand 3, single buffered']
    #allocation8 [shape = 'u8[4096]{0}', space=vmem, size = 0x1000, scoped, tag = 'output window, operand 0, single buffered']
    %10 = vsyncpa [#allocation3], 0
    %11 = vsyncpa [#allocation6], 0
    %12 = vsyncpa [#allocation4], 0
    // Predicated region
    $region2: #{linear_qnet_forward_padded.1} parent=1 // pred_check
      _
    $region3: #{linear_qnet_forward_padded.1} parent=1 // pred_check_branch
      %14 = sbr.rel (0) target = $region5
    $region4: #{linear_qnet_forward_padded.1} parent=1 // pred_region
      %s16 = ssub.s32 128, 128
      %17 = vsyncadd [#allocation3], %s16
      %s19 = sshll.u32 [#allocation2], 4
      %s20 = int_to_ptr.vmem [resolvable:$true] %s19
      %22 = dma.hbm_to_vmem [thread:$0]  %s0, 128, %s20, [#allocation3]
    $region5: #{linear_qnet_forward_padded.1} parent=1 // pred_fallthru
      _
    // Predicated region
    $region6: #{linear_qnet_forward_padded.1} parent=1 // pred_check
      _
    $region7: #{linear_qnet_forward_padded.1} parent=1 // pred_check_branch
      %24 = sbr.rel (0) target = $region9
    $region8: #{linear_qnet_forward_padded.1} parent=1 // pred_region
      %s26 = ssub.s32 256, 256
      %27 = vsyncadd [#allocation6], %s26
      %s28 = sshll.u32 [#allocation5], 4
      %s29 = int_to_ptr.vmem [resolvable:$true] %s28
      %34 = dma.hbm_to_vmem [thread:$0]  %s1, 256, %s29, [#allocation6], 128, 128, 8
    $region9: #{linear_qnet_forward_padded.1} parent=1 // pred_fallthru
      _
    // Predicated region
    $region10: #{linear_qnet_forward_padded.1} parent=1 // pred_check
      _
    $region11: #{linear_qnet_forward_padded.1} parent=1 // pred_check_branch
      %36 = sbr.rel (0) target = $region13
    $region12: #{linear_qnet_forward_padded.1} parent=1 // pred_region
      _
    $region13: #{linear_qnet_forward_padded.1} parent=1 // pred_fallthru
      _
    // Predicated region
    $region14: #{linear_qnet_forward_padded.1} parent=1 // pred_check
      _
    $region15: #{linear_qnet_forward_padded.1} parent=1 // pred_check_branch
      %38 = sbr.rel (0) target = $region17
    $region16: #{linear_qnet_forward_padded.1} parent=1 // pred_region
      %s40 = ssub.s32 512, 512
      %41 = vsyncadd [#allocation6], %s40
      %s42 = sshll.u32 [#allocation7], 4
      %s43 = int_to_ptr.vmem [resolvable:$true] %s42
      %48 = dma.hbm_to_vmem [thread:$0]  %s3, 512, %s43, [#allocation6], 128, 128, 8
    $region17: #{linear_qnet_forward_padded.1} parent=1 // pred_fallthru
      _
    // Predicated region
    $region18: #{linear_qnet_forward_padded.1} parent=1 // pred_check
      _
    $region19: #{linear_qnet_forward_padded.1} parent=1 // pred_check_branch
      %50 = sbr.rel (0) target = $region21
    $region20: #{linear_qnet_forward_padded.1} parent=1 // pred_region
      _
    $region21: #{linear_qnet_forward_padded.1} parent=1 // pred_fallthru
      _
    // Predicated region
    $region22: #{linear_qnet_forward_padded.1} parent=1 // pred_check
      _
    $region23: #{linear_qnet_forward_padded.1} parent=1 // pred_check_branch
      %52 = sbr.rel (0) target = $region25
    $region24: #{linear_qnet_forward_padded.1} parent=1 // pred_region
      %53 = dma.done [#allocation3], 128
    $region25: #{linear_qnet_forward_padded.1} parent=1 // pred_fallthru
      _
    // Predicated region
    $region26: #{linear_qnet_forward_padded.1} parent=1 // pred_check
      _
    $region27: #{linear_qnet_forward_padded.1} parent=1 // pred_check_branch
      %55 = sbr.rel (0) target = $region29
    $region28: #{linear_qnet_forward_padded.1} parent=1 // pred_region
      %56 = dma.done [#allocation6], 256
    $region29: #{linear_qnet_forward_padded.1} parent=1 // pred_fallthru
      _
    // Predicated region
    $region30: #{linear_qnet_forward_padded.1} parent=1 // pred_check
      _
    $region31: #{linear_qnet_forward_padded.1} parent=1 // pred_check_branch
      %58 = sbr.rel (0) target = $region33
    $region32: #{linear_qnet_forward_padded.1} parent=1 // pred_region
      %59 = dma.done [#allocation6], 512
    $region33: #{linear_qnet_forward_padded.1} parent=1 // pred_fallthru
      _
    %v60 = vld [vmem:[#allocation2] sm:$0xff]
    %v61 = vld [vmem:[#allocation5] sm:$0xff]
    %v62 = vld [vmem:[#allocation5 + $0x8] sm:$0x7]
    %v63 = vld [vmem:[%s2] sm:$0x1]
    %v65 = vlaneseq
    %v66 = vshrl.u32 %v65, 7
    %v67 = vsub.s32 0, %v66
    %v68 = vrot.slane %v63, %v67
    %vm70 = vcmask 89088
    %v72 = vsel %vm70, %v60, 0
    %vm74 = vcmask 1042432
    %v76 = vsel %vm74, %v62, 0
    %78 = vmatprep.subr.mxu0 0.0
    %79 = vmatpush1.msra.mxu0 %v61
    %80 = vmatprep.subr.mxu0 0.0
    %81 = vmatpush1.msra.mxu0 %v76
    %82 = vmatprep.subr.mxu0 0.0
    %83 = vmatpush1.msra.mxu0 0.0
    %84 = vmatprep.subr.mxu0 0.0
    %85 = vmatpush1.msra.mxu0 0.0
    %86 = vmatprep.subr.mxu0 0.0
    %87 = vmatpush1.msra.mxu0 0.0
    %88 = vmatprep.subr.mxu0 0.0
    %89 = vmatpush1.msra.mxu0 0.0
    %90 = vmatprep.subr.mxu0 0.0
    %91 = vmatpush1.msra.mxu0 0.0
    %92 = vmatprep.subr.mxu0 0.0
    %93 = vmatpush1.msra.mxu0 0.0
    %94 = vmatprep.subr.mxu0 0.0
    %95 = vmatpush1.msra.mxu0 0.0
    %96 = vmatprep.subr.mxu0 0.0
    %97 = vmatpush1.msra.mxu0 0.0
    %98 = vmatprep.subr.mxu0 0.0
    %99 = vmatpush1.msra.mxu0 0.0
    %100 = vmatprep.subr.mxu0 0.0
    %101 = vmatpush1.msra.mxu0 0.0
    %102 = vmatprep.subr.mxu0 0.0
    %103 = vmatpush1.msra.mxu0 0.0
    %104 = vmatprep.subr.mxu0 0.0
    %105 = vmatpush1.msra.mxu0 0.0
    %106 = vmatprep.subr.mxu0 0.0
    %107 = vmatpush1.msra.mxu0 0.0
    %108 = vmatprep.subr.mxu0 0.0
    %109 = vmatpush1.msra.mxu0 0.0
    %110 = vmatprep.subr.mxu0 0.0
    %111 = vmatpush1.msra.mxu0 0.0
    %112 = vmatprep.subr.mxu0 0.0
    %113 = vmatpush1.msra.mxu0 0.0
    %114 = vmatprep.subr.mxu0 0.0
    %115 = vmatpush1.msra.mxu0 0.0
    %116 = vmatprep.subr.mxu0 0.0
    %117 = vmatpush1.msra.mxu0 0.0
    %118 = vmatprep.subr.mxu0 0.0
    %119 = vmatpush1.msra.mxu0 0.0
    %120 = vmatprep.subr.mxu0 0.0
    %121 = vmatpush1.msra.mxu0 0.0
    %122 = vmatprep.subr.mxu0 0.0
    %123 = vmatpush1.msra.mxu0 0.0
    %124 = vmatprep.subr.mxu0 0.0
    %125 = vmatpush1.msra.mxu0 0.0
    %126 = vmatprep.subr.mxu0 0.0
    %127 = vmatpush1.msra.mxu0 0.0
    %128 = vmatprep.subr.mxu0 0.0
    %129 = vmatpush1.msra.mxu0 0.0
    %130 = vmatprep.subr.mxu0 0.0
    %131 = vmatpush1.msra.mxu0 0.0
    %132 = vmatprep.subr.mxu0 0.0
    %133 = vmatpush1.msra.mxu0 0.0
    %134 = vmatprep.subr.mxu0 0.0
    %135 = vmatpush1.msra.mxu0 0.0
    %136 = vmatprep.subr.mxu0 0.0
    %137 = vmatpush1.msra.mxu0 0.0
    %138 = vmatprep.subr.mxu0 0.0
    %139 = vmatpush1.msra.mxu0 0.0
    %140 = vmatprep.subr.mxu0 0.0
    %141 = vmatpush1.msra.mxu0 0.0
    %142 = vmatprep.mubr.f32.mxu0 0.0
    %143 = vmatmul.mubr.f32.gmra.mrb[0].mxu0 %v72
    %v144 = vpop.f32.mrb[0].mxu0
    %v145 = vadd.f32 %v68, %v144
    %v146 = vpop.f32.mrb[0].mxu0
    %147 = vdwg.mxu0
    %v148 = vmax.f32 %v145, 0.0
    %v149 = vld [vmem:[#allocation7] sm:$0xff]
    %v150 = vld [vmem:[#allocation7 + $0x8] sm:$0xff]
    %v151 = vld [vmem:[#allocation7 + $0x10] sm:$0xff]
    %v152 = vld [vmem:[#allocation7 + $0x18] sm:$0xff]
    %v153 = vld [vmem:[%s4] sm:$0x1]
    %v155 = vlaneseq
    %v156 = vshrl.u32 %v155, 7
    %v157 = vsub.s32 0, %v156
    %v158 = vrot.slane %v153, %v157
    %vm160 = vcmask 261120
    %v162 = vsel %vm160, %v148, 0
    %164 = vmatprep.subr.mxu0 0.0
    %165 = vmatpush1.msra.mxu0 %v149
    %166 = vmatprep.subr.mxu0 0.0
    %167 = vmatpush1.msra.mxu0 %v150
    %168 = vmatprep.subr.mxu0 0.0
    %169 = vmatpush1.msra.mxu0 %v151
    %170 = vmatprep.subr.mxu0 0.0
    %171 = vmatpush1.msra.mxu0 %v152
    %172 = vmatprep.subr.mxu0 0.0
    %173 = vmatpush1.msra.mxu0 0.0
    %174 = vmatprep.subr.mxu0 0.0
    %175 = vmatpush1.msra.mxu0 0.0
    %176 = vmatprep.subr.mxu0 0.0
    %177 = vmatpush1.msra.mxu0 0.0
    %178 = vmatprep.subr.mxu0 0.0
    %179 = vmatpush1.msra.mxu0 0.0
    %180 = vmatprep.subr.mxu0 0.0
    %181 = vmatpush1.msra.mxu0 0.0
    %182 = vmatprep.subr.mxu0 0.0
    %183 = vmatpush1.msra.mxu0 0.0
    %184 = vmatprep.subr.mxu0 0.0
    %185 = vmatpush1.msra.mxu0 0.0
    %186 = vmatprep.subr.mxu0 0.0
    %187 = vmatpush1.msra.mxu0 0.0
    %188 = vmatprep.subr.mxu0 0.0
    %189 = vmatpush1.msra.mxu0 0.0
    %190 = vmatprep.subr.mxu0 0.0
    %191 = vmatpush1.msra.mxu0 0.0
    %192 = vmatprep.subr.mxu0 0.0
    %193 = vmatpush1.msra.mxu0 0.0
    %194 = vmatprep.subr.mxu0 0.0
    %195 = vmatpush1.msra.mxu0 0.0
    %196 = vmatprep.subr.mxu0 0.0
    %197 = vmatpush1.msra.mxu0 0.0
    %198 = vmatprep.subr.mxu0 0.0
    %199 = vmatpush1.msra.mxu0 0.0
    %200 = vmatprep.subr.mxu0 0.0
    %201 = vmatpush1.msra.mxu0 0.0
    %202 = vmatprep.subr.mxu0 0.0
    %203 = vmatpush1.msra.mxu0 0.0
    %204 = vmatprep.subr.mxu0 0.0
    %205 = vmatpush1.msra.mxu0 0.0
    %206 = vmatprep.subr.mxu0 0.0
    %207 = vmatpush1.msra.mxu0 0.0
    %208 = vmatprep.subr.mxu0 0.0
    %209 = vmatpush1.msra.mxu0 0.0
    %210 = vmatprep.subr.mxu0 0.0
    %211 = vmatpush1.msra.mxu0 0.0
    %212 = vmatprep.subr.mxu0 0.0
    %213 = vmatpush1.msra.mxu0 0.0
    %214 = vmatprep.subr.mxu0 0.0
    %215 = vmatpush1.msra.mxu0 0.0
    %216 = vmatprep.subr.mxu0 0.0
    %217 = vmatpush1.msra.mxu0 0.0
    %218 = vmatprep.subr.mxu0 0.0
    %219 = vmatpush1.msra.mxu0 0.0
    %220 = vmatprep.subr.mxu0 0.0
    %221 = vmatpush1.msra.mxu0 0.0
    %222 = vmatprep.subr.mxu0 0.0
    %223 = vmatpush1.msra.mxu0 0.0
    %224 = vmatprep.subr.mxu0 0.0
    %225 = vmatpush1.msra.mxu0 0.0
    %226 = vmatprep.subr.mxu0 0.0
    %227 = vmatpush1.msra.mxu0 0.0
    %228 = vmatprep.mubr.f32.mxu0 0.0
    %229 = vmatmul.mubr.f32.gmra.mrb[0].mxu0 %v162
    %v230 = vpop.f32.mrb[0].mxu0
    %v231 = vadd.f32 %v158, %v230
    %v232 = vpop.f32.mrb[0].mxu0
    %233 = vdwg.mxu0
    %234 = vst [vmem:[#allocation8] sm:$0xff] %v231
    // Predicated region
    $region34: #{linear_qnet_forward_padded.1} parent=1 // pred_check
      _
    $region35: #{linear_qnet_forward_padded.1} parent=1 // pred_check_branch
      %236 = sbr.rel (0) target = $region37
    $region36: #{linear_qnet_forward_padded.1} parent=1 // pred_region
      %s238 = ssub.s32 128, 128
      %239 = vsyncadd [#allocation4], %s238
      %s241 = sshll.u32 [#allocation8], 4
      %s242 = int_to_ptr.vmem [resolvable:$true] %s241
      %244 = dma.vmem_to_hbm [thread:$0]  %s242, 128, %s5, [#allocation4]
    $region37: #{linear_qnet_forward_padded.1} parent=1 // pred_fallthru
      _
    // Predicated region
    $region38: #{linear_qnet_forward_padded.1} parent=1 // pred_check
      _
    $region39: #{linear_qnet_forward_padded.1} parent=1 // pred_check_branch
      %246 = sbr.rel (0) target = $region41
    $region40: #{linear_qnet_forward_padded.1} parent=1 // pred_region
      %247 = dma.done [#allocation4], 128
    $region41: #{linear_qnet_forward_padded.1} parent=1 // pred_fallthru
      _
    %248 = vsyncpa [#allocation3], 1
    %249 = vsyncpa [#allocation6], 1
    %250 = vsyncpa [#allocation4], 1

</llo_original>
